<compile_context>
chip_gen: v5e
topology: v5e:2x2
jax: 0.10.0
libtpu: 0.0.40
codegen_flags: <defaults>
</compile_context>

<pallas_src>
import functools

import jax
import jax.numpy as jnp
from jax.experimental import pallas as pl
from jax.experimental.pallas import tpu as pltpu

LANE = 128                      # vreg lane width
_LOG2E = 1.4426950408889634     # log2(e)


def _round_up(x, m):
    return ((x + m - 1) // m) * m


def _smearing_kernel(dist_ref, offset_ref, out_ref, *, c2, k_rows):
    # dist_ref:   (1, 128, k_rows)  d[0, j, s] = dist for local output row s*128 + j
    # offset_ref: (1, G)            gaussian centers, lane axis
    # out_ref:    (k_rows*128, G)
    off = offset_ref[...]                      # (1, G), broadcast over sublanes
    d_t = dist_ref[0]                          # (128, k_rows) lane-dense load
    for s in range(k_rows):                    # static unroll
        d = d_t[:, s:s + 1] - off              # (128, G): sub + broadcasts (VPU)
        # exp(c*d^2) == exp2((c*log2e)*d^2); two VPU muls + one EUP exp2.
        out_ref[s * 128:(s + 1) * 128, :] = jnp.exp2((c2 * d) * d).astype(out_ref.dtype)


def gaussian_smearing(dist, offset, coeff, *, out_dtype=jnp.float32, block_rows=4096):
    """Pallas implementation of GaussianSmearing.forward.

    dist: any shape (flattened like torch's dist.view(-1, 1)).
    offset: (G,) gaussian centers.  coeff: static python float.
    Returns (dist.size, G) array of dtype `out_dtype` (float32 by default).
    """
    dist_flat = jnp.asarray(dist, jnp.float32).reshape(-1)
    offset = jnp.asarray(offset, jnp.float32).reshape(-1)
    E = dist_flat.shape[0]
    G = offset.shape[0]

    # Row tile: multiple of 1024 so each tile holds an integer number of
    # 128-lane distance rows; shrink for small inputs (single grid step).
    block_rows = max(1024, (int(block_rows) // 1024) * 1024)
    block_rows = min(block_rows, _round_up(E, 1024))
    k_rows = block_rows // LANE
    num_blocks = pl.cdiv(E, block_rows)
    e_pad = num_blocks * block_rows            # pad only the tiny dist vector

    # Lane-dense, pre-transposed distances (done once in XLA on a tiny array):
    #   d3t[i, j, s] = dist[i*block_rows + s*128 + j]
    d_padded = jnp.zeros((e_pad,), jnp.float32).at[:E].set(dist_flat)
    d3t = jnp.swapaxes(d_padded.reshape(num_blocks, k_rows, LANE), 1, 2)
    offset2d = offset.reshape(1, G)

    c2 = float(coeff) * _LOG2E

    return pl.pallas_call(
        functools.partial(_smearing_kernel, c2=c2, k_rows=k_rows),
        out_shape=jax.ShapeDtypeStruct((E, G), out_dtype),   # exact E: no post-slice
        grid=(num_blocks,),
        in_specs=[
            pl.BlockSpec((1, LANE, k_rows), lambda i: (i, 0, 0)),
            pl.BlockSpec((1, G), lambda i: (0, 0)),
        ],
        out_specs=pl.BlockSpec((block_rows, G), lambda i: (i, 0)),
        compiler_params=pltpu.CompilerParams(
            dimension_semantics=("parallel",)),   # rows shard across v7x's 2 TCs
    )(d3t, offset2d)


def _reference(dist, offset, coeff):
    """Pure-JAX mirror of the torch forward for validation."""
    d = dist.reshape(-1, 1) - offset.reshape(1, -1)
    return jnp.exp(coeff * d * d)


if __name__ == "__main__":
    key = jax.random.PRNGKey(0)
    keys = jax.random.split(key, 4)

    start, stop = 0.0, 5.0
    configs = (
        # (num_gaussians, n_distances, out_dtype)
        (128, 1000, jnp.float32),   # lane-dense G, ragged final rows (masked store)
        (50, 256, jnp.float32),     # torch-default G=50: true-G block, masked vst
        (50, 6000, jnp.float32),    # multi-block grid (block_rows=4096 -> 2 steps)
        (128, 512, jnp.bfloat16),   # bf16-output option (halves write traffic)
    )

    for (num_gaussians, n_dist, dt), k in zip(configs, keys):
        offset = jnp.linspace(start, stop, num_gaussians)
        delta = (stop - start) / (num_gaussians - 1)
        coeff = -0.5 / float(delta) ** 2

        dist = jax.random.uniform(k, (n_dist,), jnp.float32, 0.0, stop)

        out = gaussian_smearing(dist, offset, coeff, out_dtype=dt)
        out = jax.block_until_ready(out)
        assert out.shape == (n_dist, num_gaussians)
        assert out.dtype == dt

        ref = _reference(dist, offset, coeff)
        if dt == jnp.float32:
            assert jnp.allclose(out, ref, atol=1e-5, rtol=1e-5), "mismatch vs reference"
        else:
            assert jnp.allclose(out.astype(jnp.float32), ref, atol=2e-2, rtol=2e-2), \
                "bf16 mismatch vs reference"

    print("KERNEL_OK")
</pallas_src>

<mosaic_0001>
module attributes {stable_mosaic.version = 11 : i64} {
  func.func @_smearing_kernel(%arg0: i32, %arg1: memref<1x128x8xf32, #tpu.memory_space<vmem>>, %arg2: memref<1x128xf32, #tpu.memory_space<vmem>>, %arg3: memref<1024x128xf32, #tpu.memory_space<vmem>>) attributes {dimension_semantics = [#tpu.dimension_semantics<parallel>], iteration_bounds = array<i64: 1>, scalar_prefetch = 0 : i64, scratch_operands = 0 : i64, tpu.core_type = #tpu.core_type<tc>, window_params = [{transform_indices = @transform_0, window_bounds = array<i64: 1, 128, 8>}, {pipeline_mode = #tpu.pipeline_mode<synchronous>, transform_indices = @transform_1, window_bounds = array<i64: 1, 128>}, {transform_indices = @transform_2, window_bounds = array<i64: 1024, 128>}]} {
    %c0 = arith.constant 0 : index
    %c0_0 = arith.constant 0 : index
    %0 = vector.load %arg2[%c0, %c0_0] : memref<1x128xf32, #tpu.memory_space<vmem>>, vector<1x128xf32>
    %c0_1 = arith.constant 0 : index
    %c0_2 = arith.constant 0 : index
    %c0_3 = arith.constant 0 : index
    %1 = vector.load %arg1[%c0_1, %c0_2, %c0_3] : memref<1x128x8xf32, #tpu.memory_space<vmem>>, vector<1x128x8xf32>
    %2 = vector.shape_cast %1 : vector<1x128x8xf32> to vector<128x8xf32>
    %3 = vector.extract_strided_slice %2 {offsets = [0, 0], sizes = [128, 1], strides = [1, 1]} : vector<128x8xf32> to vector<128x1xf32>
    %4 = vector.broadcast %3 : vector<128x1xf32> to vector<128x128xf32>
    %5 = vector.broadcast %0 : vector<1x128xf32> to vector<128x128xf32>
    %6 = arith.subf %4, %5 : vector<128x128xf32>
    %cst = arith.constant -465.384552 : f32
    %7 = vector.broadcast %cst : f32 to vector<128x128xf32>
    %8 = arith.mulf %7, %6 : vector<128x128xf32>
    %9 = arith.mulf %8, %6 : vector<128x128xf32>
    %10 = math.exp2 %9 : vector<128x128xf32>
    %c0_4 = arith.constant 0 : index
    %c0_5 = arith.constant 0 : index
    %11 = vector.load %arg3[%c0_4, %c0_5] : memref<1024x128xf32, #tpu.memory_space<vmem>>, vector<128x128xf32>
    tpu.vector_store %arg3[%c0_4, %c0_5], %10 {strides = array<i32>} : memref<1024x128xf32, #tpu.memory_space<vmem>>, vector<128x128xf32>,
    %12 = vector.extract_strided_slice %2 {offsets = [0, 1], sizes = [128, 1], strides = [1, 1]} : vector<128x8xf32> to vector<128x1xf32>
    %13 = vector.broadcast %12 : vector<128x1xf32> to vector<128x128xf32>
    %14 = vector.broadcast %0 : vector<1x128xf32> to vector<128x128xf32>
    %15 = arith.subf %13, %14 : vector<128x128xf32>
    %cst_6 = arith.constant -465.384552 : f32
    %16 = vector.broadcast %cst_6 : f32 to vector<128x128xf32>
    %17 = arith.mulf %16, %15 : vector<128x128xf32>
    %18 = arith.mulf %17, %15 : vector<128x128xf32>
    %19 = math.exp2 %18 : vector<128x128xf32>
    %c128 = arith.constant 128 : index
    %c0_7 = arith.constant 0 : index
    %20 = vector.load %arg3[%c128, %c0_7] : memref<1024x128xf32, #tpu.memory_space<vmem>>, vector<128x128xf32>
    tpu.vector_store %arg3[%c128, %c0_7], %19 {strides = array<i32>} : memref<1024x128xf32, #tpu.memory_space<vmem>>, vector<128x128xf32>,
    %21 = vector.extract_strided_slice %2 {offsets = [0, 2], sizes = [128, 1], strides = [1, 1]} : vector<128x8xf32> to vector<128x1xf32>
    %22 = vector.broadcast %21 : vector<128x1xf32> to vector<128x128xf32>
    %23 = vector.broadcast %0 : vector<1x128xf32> to vector<128x128xf32>
    %24 = arith.subf %22, %23 : vector<128x128xf32>
    %cst_8 = arith.constant -465.384552 : f32
    %25 = vector.broadcast %cst_8 : f32 to vector<128x128xf32>
    %26 = arith.mulf %25, %24 : vector<128x128xf32>
    %27 = arith.mulf %26, %24 : vector<128x128xf32>
    %28 = math.exp2 %27 : vector<128x128xf32>
    %c256 = arith.constant 256 : index
    %c0_9 = arith.constant 0 : index
    %29 = vector.load %arg3[%c256, %c0_9] : memref<1024x128xf32, #tpu.memory_space<vmem>>, vector<128x128xf32>
    tpu.vector_store %arg3[%c256, %c0_9], %28 {strides = array<i32>} : memref<1024x128xf32, #tpu.memory_space<vmem>>, vector<128x128xf32>,
    %30 = vector.extract_strided_slice %2 {offsets = [0, 3], sizes = [128, 1], strides = [1, 1]} : vector<128x8xf32> to vector<128x1xf32>
    %31 = vector.broadcast %30 : vector<128x1xf32> to vector<128x128xf32>
    %32 = vector.broadcast %0 : vector<1x128xf32> to vector<128x128xf32>
    %33 = arith.subf %31, %32 : vector<128x128xf32>
    %cst_10 = arith.constant -465.384552 : f32
    %34 = vector.broadcast %cst_10 : f32 to vector<128x128xf32>
    %35 = arith.mulf %34, %33 : vector<128x128xf32>
    %36 = arith.mulf %35, %33 : vector<128x128xf32>
    %37 = math.exp2 %36 : vector<128x128xf32>
    %c384 = arith.constant 384 : index
    %c0_11 = arith.constant 0 : index
    %38 = vector.load %arg3[%c384, %c0_11] : memref<1024x128xf32, #tpu.memory_space<vmem>>, vector<128x128xf32>
    tpu.vector_store %arg3[%c384, %c0_11], %37 {strides = array<i32>} : memref<1024x128xf32, #tpu.memory_space<vmem>>, vector<128x128xf32>,
    %39 = vector.extract_strided_slice %2 {offsets = [0, 4], sizes = [128, 1], strides = [1, 1]} : vector<128x8xf32> to vector<128x1xf32>
    %40 = vector.broadcast %39 : vector<128x1xf32> to vector<128x128xf32>
    %41 = vector.broadcast %0 : vector<1x128xf32> to vector<128x128xf32>
    %42 = arith.subf %40, %41 : vector<128x128xf32>
    %cst_12 = arith.constant -465.384552 : f32
    %43 = vector.broadcast %cst_12 : f32 to vector<128x128xf32>
    %44 = arith.mulf %43, %42 : vector<128x128xf32>
    %45 = arith.mulf %44, %42 : vector<128x128xf32>
    %46 = math.exp2 %45 : vector<128x128xf32>
    %c512 = arith.constant 512 : index
    %c0_13 = arith.constant 0 : index
    %47 = vector.load %arg3[%c512, %c0_13] : memref<1024x128xf32, #tpu.memory_space<vmem>>, vector<128x128xf32>
    tpu.vector_store %arg3[%c512, %c0_13], %46 {strides = array<i32>} : memref<1024x128xf32, #tpu.memory_space<vmem>>, vector<128x128xf32>,
    %48 = vector.extract_strided_slice %2 {offsets = [0, 5], sizes = [128, 1], strides = [1, 1]} : vector<128x8xf32> to vector<128x1xf32>
    %49 = vector.broadcast %48 : vector<128x1xf32> to vector<128x128xf32>
    %50 = vector.broadcast %0 : vector<1x128xf32> to vector<128x128xf32>
    %51 = arith.subf %49, %50 : vector<128x128xf32>
    %cst_14 = arith.constant -465.384552 : f32
    %52 = vector.broadcast %cst_14 : f32 to vector<128x128xf32>
    %53 = arith.mulf %52, %51 : vector<128x128xf32>
    %54 = arith.mulf %53, %51 : vector<128x128xf32>
    %55 = math.exp2 %54 : vector<128x128xf32>
    %c640 = arith.constant 640 : index
    %c0_15 = arith.constant 0 : index
    %56 = vector.load %arg3[%c640, %c0_15] : memref<1024x128xf32, #tpu.memory_space<vmem>>, vector<128x128xf32>
    tpu.vector_store %arg3[%c640, %c0_15], %55 {strides = array<i32>} : memref<1024x128xf32, #tpu.memory_space<vmem>>, vector<128x128xf32>,
    %57 = vector.extract_strided_slice %2 {offsets = [0, 6], sizes = [128, 1], strides = [1, 1]} : vector<128x8xf32> to vector<128x1xf32>
    %58 = vector.broadcast %57 : vector<128x1xf32> to vector<128x128xf32>
    %59 = vector.broadcast %0 : vector<1x128xf32> to vector<128x128xf32>
    %60 = arith.subf %58, %59 : vector<128x128xf32>
    %cst_16 = arith.constant -465.384552 : f32
    %61 = vector.broadcast %cst_16 : f32 to vector<128x128xf32>
    %62 = arith.mulf %61, %60 : vector<128x128xf32>
    %63 = arith.mulf %62, %60 : vector<128x128xf32>
    %64 = math.exp2 %63 : vector<128x128xf32>
    %c768 = arith.constant 768 : index
    %c0_17 = arith.constant 0 : index
    %65 = vector.load %arg3[%c768, %c0_17] : memref<1024x128xf32, #tpu.memory_space<vmem>>, vector<128x128xf32>
    tpu.vector_store %arg3[%c768, %c0_17], %64 {strides = array<i32>} : memref<1024x128xf32, #tpu.memory_space<vmem>>, vector<128x128xf32>,
    %66 = vector.extract_strided_slice %2 {offsets = [0, 7], sizes = [128, 1], strides = [1, 1]} : vector<128x8xf32> to vector<128x1xf32>
    %67 = vector.broadcast %66 : vector<128x1xf32> to vector<128x128xf32>
    %68 = vector.broadcast %0 : vector<1x128xf32> to vector<128x128xf32>
    %69 = arith.subf %67, %68 : vector<128x128xf32>
    %cst_18 = arith.constant -465.384552 : f32
    %70 = vector.broadcast %cst_18 : f32 to vector<128x128xf32>
    %71 = arith.mulf %70, %69 : vector<128x128xf32>
    %72 = arith.mulf %71, %69 : vector<128x128xf32>
    %73 = math.exp2 %72 : vector<128x128xf32>
    %c896 = arith.constant 896 : index
    %c0_19 = arith.constant 0 : index
    %74 = vector.load %arg3[%c896, %c0_19] : memref<1024x128xf32, #tpu.memory_space<vmem>>, vector<128x128xf32>
    tpu.vector_store %arg3[%c896, %c0_19], %73 {strides = array<i32>} : memref<1024x128xf32, #tpu.memory_space<vmem>>, vector<128x128xf32>,
    return
  }
  func.func @transform_0(%arg0: i32) -> (i32, i32, i32) {
    %c0_i32 = arith.constant 0 : i32
    %c0_i32_0 = arith.constant 0 : i32
    %c0_i32_1 = arith.constant 0 : i32
    return %arg0, %c0_i32, %c0_i32_0 : i32, i32, i32
  }
  func.func @transform_1(%arg0: i32) -> (i32, i32) {
    %c0_i32 = arith.constant 0 : i32
    %c0_i32_0 = arith.constant 0 : i32
    %c0_i32_1 = arith.constant 0 : i32
    return %c0_i32, %c0_i32_0 : i32, i32
  }
  func.func @transform_2(%arg0: i32) -> (i32, i32) {
    %c0_i32 = arith.constant 0 : i32
    %c0_i32_0 = arith.constant 0 : i32
    return %arg0, %c0_i32 : i32, i32
  }
}

</mosaic_0001>

<llo_original>
// kernel: tpu_custom_call.1
$region0: #{tpu_custom_call.1}
  #allocation0 [shape = 'u32[]', space=smem, size = 0x4, offset = 0x4, fixed_abs, tag = 'smem constant byte address 0x4 - core index']
  #allocation1 [shape = 'u32[72,128]{1,0:T(1,128)}', space=vmem, size = 0x9000, scoped, tag = 'internal scratch']
  %s0 = inlined_call_operand.vmem [shape: f32[1,128,8], index: 0, kind: input, shape index: {}]
  %s1 = inlined_call_operand.vmem [shape: f32[1,128], index: 1, kind: input, shape index: {}]
  %s2 = inlined_call_operand.hbm [shape: f32[1000,128], index: 2, kind: output, shape index: {}]
  %s3 = sld [smem:[#allocation0]]
  $region18: #{tpu_custom_call.1} parent=0
    _
  %s5 = ssub.s32 1, %s3
  %s6 = scalar_select 0, %s5, %s3
  $region1: #{tpu_custom_call.1} parent=0
    #allocation2 [shape = 'u8[524288]{0}', space=vmem, size = 0x80000, scoped, tag = 'output window, operand 0, single buffered']
    #allocation3 [shape = 's32[1]{0}', space=sflag, size = 0x4, scoped, tag = 'scoped memory for tpu_custom_call.1']
    %7 = vsyncpa [#allocation3], 0
    // Predicated region
    $region2: #{tpu_custom_call.1} parent=1 // pred_check
      _
    $region3: #{tpu_custom_call.1} parent=1 // pred_check_branch
      %9 = sbr.rel (0) target = $region5
    $region4: #{tpu_custom_call.1} parent=1 // pred_region
      _
    $region5: #{tpu_custom_call.1} parent=1 // pred_fallthru
      _
    // Predicated region
    $region6: #{tpu_custom_call.1} parent=1 // pred_check
      _
    $region7: #{tpu_custom_call.1} parent=1 // pred_check_branch
      %11 = sbr.rel (0) target = $region9
    $region8: #{tpu_custom_call.1} parent=1 // pred_region
      _
    $region9: #{tpu_custom_call.1} parent=1 // pred_fallthru
      _
    %v12 = vld [vmem:[%s1] sm:$0x1]
    %v13 = vld [vmem:[%s0] sm:$0xff]
    %v14 = vld [vmem:[%s0 + $0x8] sm:$0xff]
    %v15 = vld [vmem:[%s0 + $0x10] sm:$0xff]
    %v16 = vld [vmem:[%s0 + $0x18] sm:$0xff]
    %v17 = vld [vmem:[%s0 + $0x20] sm:$0xff]
    %v18 = vld [vmem:[%s0 + $0x28] sm:$0xff]
    %v19 = vld [vmem:[%s0 + $0x30] sm:$0xff]
    %v20 = vld [vmem:[%s0 + $0x38] sm:$0xff]
    %v21 = vld [vmem:[%s0 + $0x40] sm:$0xff]
    %v22 = vld [vmem:[%s0 + $0x48] sm:$0xff]
    %v23 = vld [vmem:[%s0 + $0x50] sm:$0xff]
    %v24 = vld [vmem:[%s0 + $0x58] sm:$0xff]
    %v25 = vld [vmem:[%s0 + $0x60] sm:$0xff]
    %v26 = vld [vmem:[%s0 + $0x68] sm:$0xff]
    %v27 = vld [vmem:[%s0 + $0x70] sm:$0xff]
    %v28 = vld [vmem:[%s0 + $0x78] sm:$0xff]
    %30 = vset.pattern.permute.xlu0 0
    %31 = vperm.xlu0 %30, %v13
    %v32 = vpop.permute.xlu0 %31
    %35 = vset.pattern.permute.xlu0 0
    %36 = vperm.xlu0 %35, %v14
    %v37 = vpop.permute.xlu0 %36
    %40 = vset.pattern.permute.xlu0 0
    %41 = vperm.xlu0 %40, %v15
    %v42 = vpop.permute.xlu0 %41
    %45 = vset.pattern.permute.xlu0 0
    %46 = vperm.xlu0 %45, %v16
    %v47 = vpop.permute.xlu0 %46
    %50 = vset.pattern.permute.xlu0 0
    %51 = vperm.xlu0 %50, %v17
    %v52 = vpop.permute.xlu0 %51
    %55 = vset.pattern.permute.xlu0 0
    %56 = vperm.xlu0 %55, %v18
    %v57 = vpop.permute.xlu0 %56
    %60 = vset.pattern.permute.xlu0 0
    %61 = vperm.xlu0 %60, %v19
    %v62 = vpop.permute.xlu0 %61
    %65 = vset.pattern.permute.xlu0 0
    %66 = vperm.xlu0 %65, %v20
    %v67 = vpop.permute.xlu0 %66
    %70 = vset.pattern.permute.xlu0 0
    %71 = vperm.xlu0 %70, %v21
    %v72 = vpop.permute.xlu0 %71
    %75 = vset.pattern.permute.xlu0 0
    %76 = vperm.xlu0 %75, %v22
    %v77 = vpop.permute.xlu0 %76
    %80 = vset.pattern.permute.xlu0 0
    %81 = vperm.xlu0 %80, %v23
    %v82 = vpop.permute.xlu0 %81
    %85 = vset.pattern.permute.xlu0 0
    %86 = vperm.xlu0 %85, %v24
    %v87 = vpop.permute.xlu0 %86
    %90 = vset.pattern.permute.xlu0 0
    %91 = vperm.xlu0 %90, %v25
    %v92 = vpop.permute.xlu0 %91
    %95 = vset.pattern.permute.xlu0 0
    %96 = vperm.xlu0 %95, %v26
    %v97 = vpop.permute.xlu0 %96
    %100 = vset.pattern.permute.xlu0 0
    %101 = vperm.xlu0 %100, %v27
    %v102 = vpop.permute.xlu0 %101
    %105 = vset.pattern.permute.xlu0 0
    %106 = vperm.xlu0 %105, %v28
    %v107 = vpop.permute.xlu0 %106
    %v110 = vperm.slane %v12, 0
    %v112 = vsub.f32 %v32, %v110
    %v113 = vsub.f32 %v37, %v110
    %v114 = vsub.f32 %v42, %v110
    %v115 = vsub.f32 %v47, %v110
    %v116 = vsub.f32 %v52, %v110
    %v117 = vsub.f32 %v57, %v110
    %v118 = vsub.f32 %v62, %v110
    %v119 = vsub.f32 %v67, %v110
    %v120 = vsub.f32 %v72, %v110
    %v121 = vsub.f32 %v77, %v110
    %v122 = vsub.f32 %v82, %v110
    %v123 = vsub.f32 %v87, %v110
    %v124 = vsub.f32 %v92, %v110
    %v125 = vsub.f32 %v97, %v110
    %v126 = vsub.f32 %v102, %v110
    %v127 = vsub.f32 %v107, %v110
    %v128 = vmul.f32 %v112, -465.38455
    %v129 = vmul.f32 %v113, -465.38455
    %v130 = vmul.f32 %v114, -465.38455
    %v131 = vmul.f32 %v115, -465.38455
    %v132 = vmul.f32 %v116, -465.38455
    %v133 = vmul.f32 %v117, -465.38455
    %v134 = vmul.f32 %v118, -465.38455
    %v135 = vmul.f32 %v119, -465.38455
    %v136 = vmul.f32 %v120, -465.38455
    %v137 = vmul.f32 %v121, -465.38455
    %v138 = vmul.f32 %v122, -465.38455
    %v139 = vmul.f32 %v123, -465.38455
    %v140 = vmul.f32 %v124, -465.38455
    %v141 = vmul.f32 %v125, -465.38455
    %v142 = vmul.f32 %v126, -465.38455
    %v143 = vmul.f32 %v127, -465.38455
    %v144 = vmul.f32 %v128, %v112
    %v145 = vmul.f32 %v129, %v113
    %v146 = vmul.f32 %v130, %v114
    %v147 = vmul.f32 %v131, %v115
    %v148 = vmul.f32 %v132, %v116
    %v149 = vmul.f32 %v133, %v117
    %v150 = vmul.f32 %v134, %v118
    %v151 = vmul.f32 %v135, %v119
    %v152 = vmul.f32 %v136, %v120
    %v153 = vmul.f32 %v137, %v121
    %v154 = vmul.f32 %v138, %v122
    %v155 = vmul.f32 %v139, %v123
    %v156 = vmul.f32 %v140, %v124
    %v157 = vmul.f32 %v141, %v125
    %v158 = vmul.f32 %v142, %v126
    %v159 = vmul.f32 %v143, %v127
    %v160 = vpow.pop %v144
    %v161 = vpow.pop %v145
    %v162 = vpow.pop %v146
    %v163 = vpow.pop %v147
    %v164 = vpow.pop %v148
    %v165 = vpow.pop %v149
    %v166 = vpow.pop %v150
    %v167 = vpow.pop %v151
    %v168 = vpow.pop %v152
    %v169 = vpow.pop %v153
    %v170 = vpow.pop %v154
    %v171 = vpow.pop %v155
    %v172 = vpow.pop %v156
    %v173 = vpow.pop %v157
    %v174 = vpow.pop %v158
    %v175 = vpow.pop %v159
    %176 = vst [vmem:[#allocation2] sm:$0xff] %v160
    %177 = vst [vmem:[#allocation2 + $0x8] sm:$0xff] %v161
    %178 = vst [vmem:[#allocation2 + $0x10] sm:$0xff] %v162
    %179 = vst [vmem:[#allocation2 + $0x18] sm:$0xff] %v163
    %180 = vst [vmem:[#allocation2 + $0x20] sm:$0xff] %v164
    %181 = vst [vmem:[#allocation2 + $0x28] sm:$0xff] %v165
    %182 = vst [vmem:[#allocation2 + $0x30] sm:$0xff] %v166
    %183 = vst [vmem:[#allocation2 + $0x38] sm:$0xff] %v167
    %184 = vst [vmem:[#allocation2 + $0x40] sm:$0xff] %v168
    %185 = vst [vmem:[#allocation2 + $0x48] sm:$0xff] %v169
    %186 = vst [vmem:[#allocation2 + $0x50] sm:$0xff] %v170
    %187 = vst [vmem:[#allocation2 + $0x58] sm:$0xff] %v171
    %188 = vst [vmem:[#allocation2 + $0x60] sm:$0xff] %v172
    %189 = vst [vmem:[#allocation2 + $0x68] sm:$0xff] %v173
    %190 = vst [vmem:[#allocation2 + $0x70] sm:$0xff] %v174
    %191 = vst [vmem:[#allocation2 + $0x78] sm:$0xff] %v175
    %192 = vset.pattern.permute.xlu0 1
    %193 = vperm.xlu0 %192, %v13
    %v194 = vpop.permute.xlu0 %193
    %196 = vset.pattern.permute.xlu0 1
    %197 = vperm.xlu0 %196, %v14
    %v198 = vpop.permute.xlu0 %197
    %200 = vset.pattern.permute.xlu0 1
    %201 = vperm.xlu0 %200, %v15
    %v202 = vpop.permute.xlu0 %201
    %204 = vset.pattern.permute.xlu0 1
    %205 = vperm.xlu0 %204, %v16
    %v206 = vpop.permute.xlu0 %205
    %208 = vset.pattern.permute.xlu0 1
    %209 = vperm.xlu0 %208, %v17
    %v210 = vpop.permute.xlu0 %209
    %212 = vset.pattern.permute.xlu0 1
    %213 = vperm.xlu0 %212, %v18
    %v214 = vpop.permute.xlu0 %213
    %216 = vset.pattern.permute.xlu0 1
    %217 = vperm.xlu0 %216, %v19
    %v218 = vpop.permute.xlu0 %217
    %220 = vset.pattern.permute.xlu0 1
    %221 = vperm.xlu0 %220, %v20
    %v222 = vpop.permute.xlu0 %221
    %224 = vset.pattern.permute.xlu0 1
    %225 = vperm.xlu0 %224, %v21
    %v226 = vpop.permute.xlu0 %225
    %228 = vset.pattern.permute.xlu0 1
    %229 = vperm.xlu0 %228, %v22
    %v230 = vpop.permute.xlu0 %229
    %232 = vset.pattern.permute.xlu0 1
    %233 = vperm.xlu0 %232, %v23
    %v234 = vpop.permute.xlu0 %233
    %236 = vset.pattern.permute.xlu0 1
    %237 = vperm.xlu0 %236, %v24
    %v238 = vpop.permute.xlu0 %237
    %240 = vset.pattern.permute.xlu0 1
    %241 = vperm.xlu0 %240, %v25
    %v242 = vpop.permute.xlu0 %241
    %244 = vset.pattern.permute.xlu0 1
    %245 = vperm.xlu0 %244, %v26
    %v246 = vpop.permute.xlu0 %245
    %248 = vset.pattern.permute.xlu0 1
    %249 = vperm.xlu0 %248, %v27
    %v250 = vpop.permute.xlu0 %249
    %252 = vset.pattern.permute.xlu0 1
    %253 = vperm.xlu0 %252, %v28
    %v254 = vpop.permute.xlu0 %253
    %v256 = vsub.f32 %v194, %v110
    %v257 = vsub.f32 %v198, %v110
    %v258 = vsub.f32 %v202, %v110
    %v259 = vsub.f32 %v206, %v110
    %v260 = vsub.f32 %v210, %v110
    %v261 = vsub.f32 %v214, %v110
    %v262 = vsub.f32 %v218, %v110
    %v263 = vsub.f32 %v222, %v110
    %v264 = vsub.f32 %v226, %v110
    %v265 = vsub.f32 %v230, %v110
    %v266 = vsub.f32 %v234, %v110
    %v267 = vsub.f32 %v238, %v110
    %v268 = vsub.f32 %v242, %v110
    %v269 = vsub.f32 %v246, %v110
    %v270 = vsub.f32 %v250, %v110
    %v271 = vsub.f32 %v254, %v110
    %v272 = vmul.f32 %v256, -465.38455
    %v273 = vmul.f32 %v257, -465.38455
    %v274 = vmul.f32 %v258, -465.38455
    %v275 = vmul.f32 %v259, -465.38455
    %v276 = vmul.f32 %v260, -465.38455
    %v277 = vmul.f32 %v261, -465.38455
    %v278 = vmul.f32 %v262, -465.38455
    %v279 = vmul.f32 %v263, -465.38455
    %v280 = vmul.f32 %v264, -465.38455
    %v281 = vmul.f32 %v265, -465.38455
    %v282 = vmul.f32 %v266, -465.38455
    %v283 = vmul.f32 %v267, -465.38455
    %v284 = vmul.f32 %v268, -465.38455
    %v285 = vmul.f32 %v269, -465.38455
    %v286 = vmul.f32 %v270, -465.38455
    %v287 = vmul.f32 %v271, -465.38455
    %v288 = vmul.f32 %v272, %v256
    %v289 = vmul.f32 %v273, %v257
    %v290 = vmul.f32 %v274, %v258
    %v291 = vmul.f32 %v275, %v259
    %v292 = vmul.f32 %v276, %v260
    %v293 = vmul.f32 %v277, %v261
    %v294 = vmul.f32 %v278, %v262
    %v295 = vmul.f32 %v279, %v263
    %v296 = vmul.f32 %v280, %v264
    %v297 = vmul.f32 %v281, %v265
    %v298 = vmul.f32 %v282, %v266
    %v299 = vmul.f32 %v283, %v267
    %v300 = vmul.f32 %v284, %v268
    %v301 = vmul.f32 %v285, %v269
    %v302 = vmul.f32 %v286, %v270
    %v303 = vmul.f32 %v287, %v271
    %v304 = vpow.pop %v288
    %v305 = vpow.pop %v289
    %v306 = vpow.pop %v290
    %v307 = vpow.pop %v291
    %v308 = vpow.pop %v292
    %v309 = vpow.pop %v293
    %v310 = vpow.pop %v294
    %v311 = vpow.pop %v295
    %v312 = vpow.pop %v296
    %v313 = vpow.pop %v297
    %v314 = vpow.pop %v298
    %v315 = vpow.pop %v299
    %v316 = vpow.pop %v300
    %v317 = vpow.pop %v301
    %v318 = vpow.pop %v302
    %v319 = vpow.pop %v303
    %320 = vst [vmem:[#allocation2 + $0x80] sm:$0xff] %v304
    %321 = vst [vmem:[#allocation2 + $0x88] sm:$0xff] %v305
    %322 = vst [vmem:[#allocation2 + $0x90] sm:$0xff] %v306
    %323 = vst [vmem:[#allocation2 + $0x98] sm:$0xff] %v307
    %324 = vst [vmem:[#allocation2 + $0xa0] sm:$0xff] %v308
    %325 = vst [vmem:[#allocation2 + $0xa8] sm:$0xff] %v309
    %326 = vst [vmem:[#allocation2 + $0xb0] sm:$0xff] %v310
    %327 = vst [vmem:[#allocation2 + $0xb8] sm:$0xff] %v311
    %328 = vst [vmem:[#allocation2 + $0xc0] sm:$0xff] %v312
    %329 = vst [vmem:[#allocation2 + $0xc8] sm:$0xff] %v313
    %330 = vst [vmem:[#allocation2 + $0xd0] sm:$0xff] %v314
    %331 = vst [vmem:[#allocation2 + $0xd8] sm:$0xff] %v315
    %332 = vst [vmem:[#allocation2 + $0xe0] sm:$0xff] %v316
    %333 = vst [vmem:[#allocation2 + $0xe8] sm:$0xff] %v317
    %334 = vst [vmem:[#allocation2 + $0xf0] sm:$0xff] %v318
    %335 = vst [vmem:[#allocation2 + $0xf8] sm:$0xff] %v319
    %336 = vset.pattern.permute.xlu0 2
    %337 = vperm.xlu0 %336, %v13
    %v338 = vpop.permute.xlu0 %337
    %340 = vset.pattern.permute.xlu0 2
    %341 = vperm.xlu0 %340, %v14
    %v342 = vpop.permute.xlu0 %341
    %344 = vset.pattern.permute.xlu0 2
    %345 = vperm.xlu0 %344, %v15
    %v346 = vpop.permute.xlu0 %345
    %348 = vset.pattern.permute.xlu0 2
    %349 = vperm.xlu0 %348, %v16
    %v350 = vpop.permute.xlu0 %349
    %352 = vset.pattern.permute.xlu0 2
    %353 = vperm.xlu0 %352, %v17
    %v354 = vpop.permute.xlu0 %353
    %356 = vset.pattern.permute.xlu0 2
    %357 = vperm.xlu0 %356, %v18
    %v358 = vpop.permute.xlu0 %357
    %360 = vset.pattern.permute.xlu0 2
    %361 = vperm.xlu0 %360, %v19
    %v362 = vpop.permute.xlu0 %361
    %364 = vset.pattern.permute.xlu0 2
    %365 = vperm.xlu0 %364, %v20
    %v366 = vpop.permute.xlu0 %365
    %368 = vset.pattern.permute.xlu0 2
    %369 = vperm.xlu0 %368, %v21
    %v370 = vpop.permute.xlu0 %369
    %372 = vset.pattern.permute.xlu0 2
    %373 = vperm.xlu0 %372, %v22
    %v374 = vpop.permute.xlu0 %373
    %376 = vset.pattern.permute.xlu0 2
    %377 = vperm.xlu0 %376, %v23
    %v378 = vpop.permute.xlu0 %377
    %380 = vset.pattern.permute.xlu0 2
    %381 = vperm.xlu0 %380, %v24
    %v382 = vpop.permute.xlu0 %381
    %384 = vset.pattern.permute.xlu0 2
    %385 = vperm.xlu0 %384, %v25
    %v386 = vpop.permute.xlu0 %385
    %388 = vset.pattern.permute.xlu0 2
    %389 = vperm.xlu0 %388, %v26
    %v390 = vpop.permute.xlu0 %389
    %392 = vset.pattern.permute.xlu0 2
    %393 = vperm.xlu0 %392, %v27
    %v394 = vpop.permute.xlu0 %393
    %396 = vset.pattern.permute.xlu0 2
    %397 = vperm.xlu0 %396, %v28
    %v398 = vpop.permute.xlu0 %397
    %v400 = vsub.f32 %v338, %v110
    %v401 = vsub.f32 %v342, %v110
    %v402 = vsub.f32 %v346, %v110
    %v403 = vsub.f32 %v350, %v110
    %v404 = vsub.f32 %v354, %v110
    %v405 = vsub.f32 %v358, %v110
    %v406 = vsub.f32 %v362, %v110
    %v407 = vsub.f32 %v366, %v110
    %v408 = vsub.f32 %v370, %v110
    %v409 = vsub.f32 %v374, %v110
    %v410 = vsub.f32 %v378, %v110
    %v411 = vsub.f32 %v382, %v110
    %v412 = vsub.f32 %v386, %v110
    %v413 = vsub.f32 %v390, %v110
    %v414 = vsub.f32 %v394, %v110
    %v415 = vsub.f32 %v398, %v110
    %v416 = vmul.f32 %v400, -465.38455
    %v417 = vmul.f32 %v401, -465.38455
    %v418 = vmul.f32 %v402, -465.38455
    %v419 = vmul.f32 %v403, -465.38455
    %v420 = vmul.f32 %v404, -465.38455
    %v421 = vmul.f32 %v405, -465.38455
    %v422 = vmul.f32 %v406, -465.38455
    %v423 = vmul.f32 %v407, -465.38455
    %v424 = vmul.f32 %v408, -465.38455
    %v425 = vmul.f32 %v409, -465.38455
    %v426 = vmul.f32 %v410, -465.38455
    %v427 = vmul.f32 %v411, -465.38455
    %v428 = vmul.f32 %v412, -465.38455
    %v429 = vmul.f32 %v413, -465.38455
    %v430 = vmul.f32 %v414, -465.38455
    %v431 = vmul.f32 %v415, -465.38455
    %v432 = vmul.f32 %v416, %v400
    %v433 = vmul.f32 %v417, %v401
    %v434 = vmul.f32 %v418, %v402
    %v435 = vmul.f32 %v419, %v403
    %v436 = vmul.f32 %v420, %v404
    %v437 = vmul.f32 %v421, %v405
    %v438 = vmul.f32 %v422, %v406
    %v439 = vmul.f32 %v423, %v407
    %v440 = vmul.f32 %v424, %v408
    %v441 = vmul.f32 %v425, %v409
    %v442 = vmul.f32 %v426, %v410
    %v443 = vmul.f32 %v427, %v411
    %v444 = vmul.f32 %v428, %v412
    %v445 = vmul.f32 %v429, %v413
    %v446 = vmul.f32 %v430, %v414
    %v447 = vmul.f32 %v431, %v415
    %v448 = vpow.pop %v432
    %v449 = vpow.pop %v433
    %v450 = vpow.pop %v434
    %v451 = vpow.pop %v435
    %v452 = vpow.pop %v436
    %v453 = vpow.pop %v437
    %v454 = vpow.pop %v438
    %v455 = vpow.pop %v439
    %v456 = vpow.pop %v440
    %v457 = vpow.pop %v441
    %v458 = vpow.pop %v442
    %v459 = vpow.pop %v443
    %v460 = vpow.pop %v444
    %v461 = vpow.pop %v445
    %v462 = vpow.pop %v446
    %v463 = vpow.pop %v447
    %464 = vst [vmem:[#allocation2 + $0x100] sm:$0xff] %v448
    %465 = vst [vmem:[#allocation2 + $0x108] sm:$0xff] %v449
    %466 = vst [vmem:[#allocation2 + $0x110] sm:$0xff] %v450
    %467 = vst [vmem:[#allocation2 + $0x118] sm:$0xff] %v451
    %468 = vst [vmem:[#allocation2 + $0x120] sm:$0xff] %v452
    %469 = vst [vmem:[#allocation2 + $0x128] sm:$0xff] %v453
    %470 = vst [vmem:[#allocation2 + $0x130] sm:$0xff] %v454
    %471 = vst [vmem:[#allocation2 + $0x138] sm:$0xff] %v455
    %472 = vst [vmem:[#allocation2 + $0x140] sm:$0xff] %v456
    %473 = vst [vmem:[#allocation2 + $0x148] sm:$0xff] %v457
    %474 = vst [vmem:[#allocation2 + $0x150] sm:$0xff] %v458
    %475 = vst [vmem:[#allocation2 + $0x158] sm:$0xff] %v459
    %476 = vst [vmem:[#allocation2 + $0x160] sm:$0xff] %v460
    %477 = vst [vmem:[#allocation2 + $0x168] sm:$0xff] %v461
    %478 = vst [vmem:[#allocation2 + $0x170] sm:$0xff] %v462
    %479 = vst [vmem:[#allocation2 + $0x178] sm:$0xff] %v463
    %480 = vset.pattern.permute.xlu0 3
    %481 = vperm.xlu0 %480, %v13
    %v482 = vpop.permute.xlu0 %481
    %484 = vset.pattern.permute.xlu0 3
    %485 = vperm.xlu0 %484, %v14
    %v486 = vpop.permute.xlu0 %485
    %488 = vset.pattern.permute.xlu0 3
    %489 = vperm.xlu0 %488, %v15
    %v490 = vpop.permute.xlu0 %489
    %492 = vset.pattern.permute.xlu0 3
    %493 = vperm.xlu0 %492, %v16
    %v494 = vpop.permute.xlu0 %493
    %496 = vset.pattern.permute.xlu0 3
    %497 = vperm.xlu0 %496, %v17
    %v498 = vpop.permute.xlu0 %497
    %500 = vset.pattern.permute.xlu0 3
    %501 = vperm.xlu0 %500, %v18
    %v502 = vpop.permute.xlu0 %501
    %504 = vset.pattern.permute.xlu0 3
    %505 = vperm.xlu0 %504, %v19
    %v506 = vpop.permute.xlu0 %505
    %508 = vset.pattern.permute.xlu0 3
    %509 = vperm.xlu0 %508, %v20
    %v510 = vpop.permute.xlu0 %509
    %512 = vset.pattern.permute.xlu0 3
    %513 = vperm.xlu0 %512, %v21
    %v514 = vpop.permute.xlu0 %513
    %516 = vset.pattern.permute.xlu0 3
    %517 = vperm.xlu0 %516, %v22
    %v518 = vpop.permute.xlu0 %517
    %520 = vset.pattern.permute.xlu0 3
    %521 = vperm.xlu0 %520, %v23
    %v522 = vpop.permute.xlu0 %521
    %524 = vset.pattern.permute.xlu0 3
    %525 = vperm.xlu0 %524, %v24
    %v526 = vpop.permute.xlu0 %525
    %528 = vset.pattern.permute.xlu0 3
    %529 = vperm.xlu0 %528, %v25
    %v530 = vpop.permute.xlu0 %529
    %532 = vset.pattern.permute.xlu0 3
    %533 = vperm.xlu0 %532, %v26
    %v534 = vpop.permute.xlu0 %533
    %536 = vset.pattern.permute.xlu0 3
    %537 = vperm.xlu0 %536, %v27
    %v538 = vpop.permute.xlu0 %537
    %540 = vset.pattern.permute.xlu0 3
    %541 = vperm.xlu0 %540, %v28
    %v542 = vpop.permute.xlu0 %541
    %v544 = vsub.f32 %v482, %v110
    %v545 = vsub.f32 %v486, %v110
    %v546 = vsub.f32 %v490, %v110
    %v547 = vsub.f32 %v494, %v110
    %v548 = vsub.f32 %v498, %v110
    %v549 = vsub.f32 %v502, %v110
    %v550 = vsub.f32 %v506, %v110
    %v551 = vsub.f32 %v510, %v110
    %v552 = vsub.f32 %v514, %v110
    %v553 = vsub.f32 %v518, %v110
    %v554 = vsub.f32 %v522, %v110
    %v555 = vsub.f32 %v526, %v110
    %v556 = vsub.f32 %v530, %v110
    %v557 = vsub.f32 %v534, %v110
    %v558 = vsub.f32 %v538, %v110
    %v559 = vsub.f32 %v542, %v110
    %v560 = vmul.f32 %v544, -465.38455
    %v561 = vmul.f32 %v545, -465.38455
    %v562 = vmul.f32 %v546, -465.38455
    %v563 = vmul.f32 %v547, -465.38455
    %v564 = vmul.f32 %v548, -465.38455
    %v565 = vmul.f32 %v549, -465.38455
    %v566 = vmul.f32 %v550, -465.38455
    %v567 = vmul.f32 %v551, -465.38455
    %v568 = vmul.f32 %v552, -465.38455
    %v569 = vmul.f32 %v553, -465.38455
    %v570 = vmul.f32 %v554, -465.38455
    %v571 = vmul.f32 %v555, -465.38455
    %v572 = vmul.f32 %v556, -465.38455
    %v573 = vmul.f32 %v557, -465.38455
    %v574 = vmul.f32 %v558, -465.38455
    %v575 = vmul.f32 %v559, -465.38455
    %v576 = vmul.f32 %v560, %v544
    %v577 = vmul.f32 %v561, %v545
    %v578 = vmul.f32 %v562, %v546
    %v579 = vmul.f32 %v563, %v547
    %v580 = vmul.f32 %v564, %v548
    %v581 = vmul.f32 %v565, %v549
    %v582 = vmul.f32 %v566, %v550
    %v583 = vmul.f32 %v567, %v551
    %v584 = vmul.f32 %v568, %v552
    %v585 = vmul.f32 %v569, %v553
    %v586 = vmul.f32 %v570, %v554
    %v587 = vmul.f32 %v571, %v555
    %v588 = vmul.f32 %v572, %v556
    %v589 = vmul.f32 %v573, %v557
    %v590 = vmul.f32 %v574, %v558
    %v591 = vmul.f32 %v575, %v559
    %v592 = vpow.pop %v576
    %v593 = vpow.pop %v577
    %v594 = vpow.pop %v578
    %v595 = vpow.pop %v579
    %v596 = vpow.pop %v580
    %v597 = vpow.pop %v581
    %v598 = vpow.pop %v582
    %v599 = vpow.pop %v583
    %v600 = vpow.pop %v584
    %v601 = vpow.pop %v585
    %v602 = vpow.pop %v586
    %v603 = vpow.pop %v587
    %v604 = vpow.pop %v588
    %v605 = vpow.pop %v589
    %v606 = vpow.pop %v590
    %v607 = vpow.pop %v591
    %608 = vst [vmem:[#allocation2 + $0x180] sm:$0xff] %v592
    %609 = vst [vmem:[#allocation2 + $0x188] sm:$0xff] %v593
    %610 = vst [vmem:[#allocation2 + $0x190] sm:$0xff] %v594
    %611 = vst [vmem:[#allocation2 + $0x198] sm:$0xff] %v595
    %612 = vst [vmem:[#allocation2 + $0x1a0] sm:$0xff] %v596
    %613 = vst [vmem:[#allocation2 + $0x1a8] sm:$0xff] %v597
    %614 = vst [vmem:[#allocation2 + $0x1b0] sm:$0xff] %v598
    %615 = vst [vmem:[#allocation2 + $0x1b8] sm:$0xff] %v599
    %616 = vst [vmem:[#allocation2 + $0x1c0] sm:$0xff] %v600
    %617 = vst [vmem:[#allocation2 + $0x1c8] sm:$0xff] %v601
    %618 = vst [vmem:[#allocation2 + $0x1d0] sm:$0xff] %v602
    %619 = vst [vmem:[#allocation2 + $0x1d8] sm:$0xff] %v603
    %620 = vst [vmem:[#allocation2 + $0x1e0] sm:$0xff] %v604
    %621 = vst [vmem:[#allocation2 + $0x1e8] sm:$0xff] %v605
    %622 = vst [vmem:[#allocation2 + $0x1f0] sm:$0xff] %v606
    %623 = vst [vmem:[#allocation2 + $0x1f8] sm:$0xff] %v607
    %624 = vset.pattern.permute.xlu0 4
    %625 = vperm.xlu0 %624, %v13
    %v626 = vpop.permute.xlu0 %625
    %628 = vset.pattern.permute.xlu0 4
    %629 = vperm.xlu0 %628, %v14
    %v630 = vpop.permute.xlu0 %629
    %632 = vset.pattern.permute.xlu0 4
    %633 = vperm.xlu0 %632, %v15
    %v634 = vpop.permute.xlu0 %633
    %636 = vset.pattern.permute.xlu0 4
    %637 = vperm.xlu0 %636, %v16
    %v638 = vpop.permute.xlu0 %637
    %640 = vset.pattern.permute.xlu0 4
    %641 = vperm.xlu0 %640, %v17
    %v642 = vpop.permute.xlu0 %641
    %644 = vset.pattern.permute.xlu0 4
    %645 = vperm.xlu0 %644, %v18
    %v646 = vpop.permute.xlu0 %645
    %648 = vset.pattern.permute.xlu0 4
    %649 = vperm.xlu0 %648, %v19
    %v650 = vpop.permute.xlu0 %649
    %652 = vset.pattern.permute.xlu0 4
    %653 = vperm.xlu0 %652, %v20
    %v654 = vpop.permute.xlu0 %653
    %656 = vset.pattern.permute.xlu0 4
    %657 = vperm.xlu0 %656, %v21
    %v658 = vpop.permute.xlu0 %657
    %660 = vset.pattern.permute.xlu0 4
    %661 = vperm.xlu0 %660, %v22
    %v662 = vpop.permute.xlu0 %661
    %664 = vset.pattern.permute.xlu0 4
    %665 = vperm.xlu0 %664, %v23
    %v666 = vpop.permute.xlu0 %665
    %668 = vset.pattern.permute.xlu0 4
    %669 = vperm.xlu0 %668, %v24
    %v670 = vpop.permute.xlu0 %669
    %672 = vset.pattern.permute.xlu0 4
    %673 = vperm.xlu0 %672, %v25
    %v674 = vpop.permute.xlu0 %673
    %676 = vset.pattern.permute.xlu0 4
    %677 = vperm.xlu0 %676, %v26
    %v678 = vpop.permute.xlu0 %677
    %680 = vset.pattern.permute.xlu0 4
    %681 = vperm.xlu0 %680, %v27
    %v682 = vpop.permute.xlu0 %681
    %684 = vset.pattern.permute.xlu0 4
    %685 = vperm.xlu0 %684, %v28
    %v686 = vpop.permute.xlu0 %685
    %v688 = vsub.f32 %v626, %v110
    %v689 = vsub.f32 %v630, %v110
    %v690 = vsub.f32 %v634, %v110
    %v691 = vsub.f32 %v638, %v110
    %v692 = vsub.f32 %v642, %v110
    %v693 = vsub.f32 %v646, %v110
    %v694 = vsub.f32 %v650, %v110
    %v695 = vsub.f32 %v654, %v110
    %v696 = vsub.f32 %v658, %v110
    %v697 = vsub.f32 %v662, %v110
    %v698 = vsub.f32 %v666, %v110
    %v699 = vsub.f32 %v670, %v110
    %v700 = vsub.f32 %v674, %v110
    %v701 = vsub.f32 %v678, %v110
    %v702 = vsub.f32 %v682, %v110
    %v703 = vsub.f32 %v686, %v110
    %v704 = vmul.f32 %v688, -465.38455
    %v705 = vmul.f32 %v689, -465.38455
    %v706 = vmul.f32 %v690, -465.38455
    %v707 = vmul.f32 %v691, -465.38455
    %v708 = vmul.f32 %v692, -465.38455
    %v709 = vmul.f32 %v693, -465.38455
    %v710 = vmul.f32 %v694, -465.38455
    %v711 = vmul.f32 %v695, -465.38455
    %v712 = vmul.f32 %v696, -465.38455
    %v713 = vmul.f32 %v697, -465.38455
    %v714 = vmul.f32 %v698, -465.38455
    %v715 = vmul.f32 %v699, -465.38455
    %v716 = vmul.f32 %v700, -465.38455
    %v717 = vmul.f32 %v701, -465.38455
    %v718 = vmul.f32 %v702, -465.38455
    %v719 = vmul.f32 %v703, -465.38455
    %v720 = vmul.f32 %v704, %v688
    %v721 = vmul.f32 %v705, %v689
    %v722 = vmul.f32 %v706, %v690
    %v723 = vmul.f32 %v707, %v691
    %v724 = vmul.f32 %v708, %v692
    %v725 = vmul.f32 %v709, %v693
    %v726 = vmul.f32 %v710, %v694
    %v727 = vmul.f32 %v711, %v695
    %v728 = vmul.f32 %v712, %v696
    %v729 = vmul.f32 %v713, %v697
    %v730 = vmul.f32 %v714, %v698
    %v731 = vmul.f32 %v715, %v699
    %v732 = vmul.f32 %v716, %v700
    %v733 = vmul.f32 %v717, %v701
    %v734 = vmul.f32 %v718, %v702
    %v735 = vmul.f32 %v719, %v703
    %v736 = vpow.pop %v720
    %v737 = vpow.pop %v721
    %v738 = vpow.pop %v722
    %v739 = vpow.pop %v723
    %v740 = vpow.pop %v724
    %v741 = vpow.pop %v725
    %v742 = vpow.pop %v726
    %v743 = vpow.pop %v727
    %v744 = vpow.pop %v728
    %v745 = vpow.pop %v729
    %v746 = vpow.pop %v730
    %v747 = vpow.pop %v731
    %v748 = vpow.pop %v732
    %v749 = vpow.pop %v733
    %v750 = vpow.pop %v734
    %v751 = vpow.pop %v735
    %752 = vst [vmem:[#allocation2 + $0x200] sm:$0xff] %v736
    %753 = vst [vmem:[#allocation2 + $0x208] sm:$0xff] %v737
    %754 = vst [vmem:[#allocation2 + $0x210] sm:$0xff] %v738
    %755 = vst [vmem:[#allocation2 + $0x218] sm:$0xff] %v739
    %756 = vst [vmem:[#allocation2 + $0x220] sm:$0xff] %v740
    %757 = vst [vmem:[#allocation2 + $0x228] sm:$0xff] %v741
    %758 = vst [vmem:[#allocation2 + $0x230] sm:$0xff] %v742
    %759 = vst [vmem:[#allocation2 + $0x238] sm:$0xff] %v743
    %760 = vst [vmem:[#allocation2 + $0x240] sm:$0xff] %v744
    %761 = vst [vmem:[#allocation2 + $0x248] sm:$0xff] %v745
    %762 = vst [vmem:[#allocation2 + $0x250] sm:$0xff] %v746
    %763 = vst [vmem:[#allocation2 + $0x258] sm:$0xff] %v747
    %764 = vst [vmem:[#allocation2 + $0x260] sm:$0xff] %v748
    %765 = vst [vmem:[#allocation2 + $0x268] sm:$0xff] %v749
    %766 = vst [vmem:[#allocation2 + $0x270] sm:$0xff] %v750
    %767 = vst [vmem:[#allocation2 + $0x278] sm:$0xff] %v751
    %768 = vset.pattern.permute.xlu0 5
    %769 = vperm.xlu0 %768, %v13
    %v770 = vpop.permute.xlu0 %769
    %772 = vset.pattern.permute.xlu0 5
    %773 = vperm.xlu0 %772, %v14
    %v774 = vpop.permute.xlu0 %773
    %776 = vset.pattern.permute.xlu0 5
    %777 = vperm.xlu0 %776, %v15
    %v778 = vpop.permute.xlu0 %777
    %780 = vset.pattern.permute.xlu0 5
    %781 = vperm.xlu0 %780, %v16
    %v782 = vpop.permute.xlu0 %781
    %784 = vset.pattern.permute.xlu0 5
    %785 = vperm.xlu0 %784, %v17
    %v786 = vpop.permute.xlu0 %785
    %788 = vset.pattern.permute.xlu0 5
    %789 = vperm.xlu0 %788, %v18
    %v790 = vpop.permute.xlu0 %789
    %792 = vset.pattern.permute.xlu0 5
    %793 = vperm.xlu0 %792, %v19
    %v794 = vpop.permute.xlu0 %793
    %796 = vset.pattern.permute.xlu0 5
    %797 = vperm.xlu0 %796, %v20
    %v798 = vpop.permute.xlu0 %797
    %800 = vset.pattern.permute.xlu0 5
    %801 = vperm.xlu0 %800, %v21
    %v802 = vpop.permute.xlu0 %801
    %804 = vset.pattern.permute.xlu0 5
    %805 = vperm.xlu0 %804, %v22
    %v806 = vpop.permute.xlu0 %805
    %808 = vset.pattern.permute.xlu0 5
    %809 = vperm.xlu0 %808, %v23
    %v810 = vpop.permute.xlu0 %809
    %812 = vset.pattern.permute.xlu0 5
    %813 = vperm.xlu0 %812, %v24
    %v814 = vpop.permute.xlu0 %813
    %816 = vset.pattern.permute.xlu0 5
    %817 = vperm.xlu0 %816, %v25
    %v818 = vpop.permute.xlu0 %817
    %820 = vset.pattern.permute.xlu0 5
    %821 = vperm.xlu0 %820, %v26
    %v822 = vpop.permute.xlu0 %821
    %824 = vset.pattern.permute.xlu0 5
    %825 = vperm.xlu0 %824, %v27
    %v826 = vpop.permute.xlu0 %825
    %828 = vset.pattern.permute.xlu0 5
    %829 = vperm.xlu0 %828, %v28
    %v830 = vpop.permute.xlu0 %829
    %v832 = vsub.f32 %v770, %v110
    %v833 = vsub.f32 %v774, %v110
    %v834 = vsub.f32 %v778, %v110
    %v835 = vsub.f32 %v782, %v110
    %v836 = vsub.f32 %v786, %v110
    %v837 = vsub.f32 %v790, %v110
    %v838 = vsub.f32 %v794, %v110
    %v839 = vsub.f32 %v798, %v110
    %v840 = vsub.f32 %v802, %v110
    %v841 = vsub.f32 %v806, %v110
    %v842 = vsub.f32 %v810, %v110
    %v843 = vsub.f32 %v814, %v110
    %v844 = vsub.f32 %v818, %v110
    %v845 = vsub.f32 %v822, %v110
    %v846 = vsub.f32 %v826, %v110
    %v847 = vsub.f32 %v830, %v110
    %v848 = vmul.f32 %v832, -465.38455
    %v849 = vmul.f32 %v833, -465.38455
    %v850 = vmul.f32 %v834, -465.38455
    %v851 = vmul.f32 %v835, -465.38455
    %v852 = vmul.f32 %v836, -465.38455
    %v853 = vmul.f32 %v837, -465.38455
    %v854 = vmul.f32 %v838, -465.38455
    %v855 = vmul.f32 %v839, -465.38455
    %v856 = vmul.f32 %v840, -465.38455
    %v857 = vmul.f32 %v841, -465.38455
    %v858 = vmul.f32 %v842, -465.38455
    %v859 = vmul.f32 %v843, -465.38455
    %v860 = vmul.f32 %v844, -465.38455
    %v861 = vmul.f32 %v845, -465.38455
    %v862 = vmul.f32 %v846, -465.38455
    %v863 = vmul.f32 %v847, -465.38455
    %v864 = vmul.f32 %v848, %v832
    %v865 = vmul.f32 %v849, %v833
    %v866 = vmul.f32 %v850, %v834
    %v867 = vmul.f32 %v851, %v835
    %v868 = vmul.f32 %v852, %v836
    %v869 = vmul.f32 %v853, %v837
    %v870 = vmul.f32 %v854, %v838
    %v871 = vmul.f32 %v855, %v839
    %v872 = vmul.f32 %v856, %v840
    %v873 = vmul.f32 %v857, %v841
    %v874 = vmul.f32 %v858, %v842
    %v875 = vmul.f32 %v859, %v843
    %v876 = vmul.f32 %v860, %v844
    %v877 = vmul.f32 %v861, %v845
    %v878 = vmul.f32 %v862, %v846
    %v879 = vmul.f32 %v863, %v847
    %v880 = vpow.pop %v864
    %v881 = vpow.pop %v865
    %v882 = vpow.pop %v866
    %v883 = vpow.pop %v867
    %v884 = vpow.pop %v868
    %v885 = vpow.pop %v869
    %v886 = vpow.pop %v870
    %v887 = vpow.pop %v871
    %v888 = vpow.pop %v872
    %v889 = vpow.pop %v873
    %v890 = vpow.pop %v874
    %v891 = vpow.pop %v875
    %v892 = vpow.pop %v876
    %v893 = vpow.pop %v877
    %v894 = vpow.pop %v878
    %v895 = vpow.pop %v879
    %896 = vst [vmem:[#allocation2 + $0x280] sm:$0xff] %v880
    %897 = vst [vmem:[#allocation2 + $0x288] sm:$0xff] %v881
    %898 = vst [vmem:[#allocation2 + $0x290] sm:$0xff] %v882
    %899 = vst [vmem:[#allocation2 + $0x298] sm:$0xff] %v883
    %900 = vst [vmem:[#allocation2 + $0x2a0] sm:$0xff] %v884
    %901 = vst [vmem:[#allocation2 + $0x2a8] sm:$0xff] %v885
    %902 = vst [vmem:[#allocation2 + $0x2b0] sm:$0xff] %v886
    %903 = vst [vmem:[#allocation2 + $0x2b8] sm:$0xff] %v887
    %904 = vst [vmem:[#allocation2 + $0x2c0] sm:$0xff] %v888
    %905 = vst [vmem:[#allocation2 + $0x2c8] sm:$0xff] %v889
    %906 = vst [vmem:[#allocation2 + $0x2d0] sm:$0xff] %v890
    %907 = vst [vmem:[#allocation2 + $0x2d8] sm:$0xff] %v891
    %908 = vst [vmem:[#allocation2 + $0x2e0] sm:$0xff] %v892
    %909 = vst [vmem:[#allocation2 + $0x2e8] sm:$0xff] %v893
    %910 = vst [vmem:[#allocation2 + $0x2f0] sm:$0xff] %v894
    %911 = vst [vmem:[#allocation2 + $0x2f8] sm:$0xff] %v895
    %912 = vset.pattern.permute.xlu0 6
    %913 = vperm.xlu0 %912, %v13
    %v914 = vpop.permute.xlu0 %913
    %916 = vset.pattern.permute.xlu0 6
    %917 = vperm.xlu0 %916, %v14
    %v918 = vpop.permute.xlu0 %917
    %920 = vset.pattern.permute.xlu0 6
    %921 = vperm.xlu0 %920, %v15
    %v922 = vpop.permute.xlu0 %921
    %924 = vset.pattern.permute.xlu0 6
    %925 = vperm.xlu0 %924, %v16
    %v926 = vpop.permute.xlu0 %925
    %928 = vset.pattern.permute.xlu0 6
    %929 = vperm.xlu0 %928, %v17
    %v930 = vpop.permute.xlu0 %929
    %932 = vset.pattern.permute.xlu0 6
    %933 = vperm.xlu0 %932, %v18
    %v934 = vpop.permute.xlu0 %933
    %936 = vset.pattern.permute.xlu0 6
    %937 = vperm.xlu0 %936, %v19
    %v938 = vpop.permute.xlu0 %937
    %940 = vset.pattern.permute.xlu0 6
    %941 = vperm.xlu0 %940, %v20
    %v942 = vpop.permute.xlu0 %941
    %944 = vset.pattern.permute.xlu0 6
    %945 = vperm.xlu0 %944, %v21
    %v946 = vpop.permute.xlu0 %945
    %948 = vset.pattern.permute.xlu0 6
    %949 = vperm.xlu0 %948, %v22
    %v950 = vpop.permute.xlu0 %949
    %952 = vset.pattern.permute.xlu0 6
    %953 = vperm.xlu0 %952, %v23
    %v954 = vpop.permute.xlu0 %953
    %956 = vset.pattern.permute.xlu0 6
    %957 = vperm.xlu0 %956, %v24
    %v958 = vpop.permute.xlu0 %957
    %960 = vset.pattern.permute.xlu0 6
    %961 = vperm.xlu0 %960, %v25
    %v962 = vpop.permute.xlu0 %961
    %964 = vset.pattern.permute.xlu0 6
    %965 = vperm.xlu0 %964, %v26
    %v966 = vpop.permute.xlu0 %965
    %968 = vset.pattern.permute.xlu0 6
    %969 = vperm.xlu0 %968, %v27
    %v970 = vpop.permute.xlu0 %969
    %972 = vset.pattern.permute.xlu0 6
    %973 = vperm.xlu0 %972, %v28
    %v974 = vpop.permute.xlu0 %973
    %v976 = vsub.f32 %v914, %v110
    %v977 = vsub.f32 %v918, %v110
    %v978 = vsub.f32 %v922, %v110
    %v979 = vsub.f32 %v926, %v110
    %v980 = vsub.f32 %v930, %v110
    %v981 = vsub.f32 %v934, %v110
    %v982 = vsub.f32 %v938, %v110
    %v983 = vsub.f32 %v942, %v110
    %v984 = vsub.f32 %v946, %v110
    %v985 = vsub.f32 %v950, %v110
    %v986 = vsub.f32 %v954, %v110
    %v987 = vsub.f32 %v958, %v110
    %v988 = vsub.f32 %v962, %v110
    %v989 = vsub.f32 %v966, %v110
    %v990 = vsub.f32 %v970, %v110
    %v991 = vsub.f32 %v974, %v110
    %v992 = vmul.f32 %v976, -465.38455
    %v993 = vmul.f32 %v977, -465.38455
    %v994 = vmul.f32 %v978, -465.38455
    %v995 = vmul.f32 %v979, -465.38455
    %v996 = vmul.f32 %v980, -465.38455
    %v997 = vmul.f32 %v981, -465.38455
    %v998 = vmul.f32 %v982, -465.38455
    %v999 = vmul.f32 %v983, -465.38455
    %v1000 = vmul.f32 %v984, -465.38455
    %v1001 = vmul.f32 %v985, -465.38455
    %v1002 = vmul.f32 %v986, -465.38455
    %v1003 = vmul.f32 %v987, -465.38455
    %v1004 = vmul.f32 %v988, -465.38455
    %v1005 = vmul.f32 %v989, -465.38455
    %v1006 = vmul.f32 %v990, -465.38455
    %v1007 = vmul.f32 %v991, -465.38455
    %v1008 = vmul.f32 %v992, %v976
    %v1009 = vmul.f32 %v993, %v977
    %v1010 = vmul.f32 %v994, %v978
    %v1011 = vmul.f32 %v995, %v979
    %v1012 = vmul.f32 %v996, %v980
    %v1013 = vmul.f32 %v997, %v981
    %v1014 = vmul.f32 %v998, %v982
    %v1015 = vmul.f32 %v999, %v983
    %v1016 = vmul.f32 %v1000, %v984
    %v1017 = vmul.f32 %v1001, %v985
    %v1018 = vmul.f32 %v1002, %v986
    %v1019 = vmul.f32 %v1003, %v987
    %v1020 = vmul.f32 %v1004, %v988
    %v1021 = vmul.f32 %v1005, %v989
    %v1022 = vmul.f32 %v1006, %v990
    %v1023 = vmul.f32 %v1007, %v991
    %v1024 = vpow.pop %v1008
    %v1025 = vpow.pop %v1009
    %v1026 = vpow.pop %v1010
    %v1027 = vpow.pop %v1011
    %v1028 = vpow.pop %v1012
    %v1029 = vpow.pop %v1013
    %v1030 = vpow.pop %v1014
    %v1031 = vpow.pop %v1015
    %v1032 = vpow.pop %v1016
    %v1033 = vpow.pop %v1017
    %v1034 = vpow.pop %v1018
    %v1035 = vpow.pop %v1019
    %v1036 = vpow.pop %v1020
    %v1037 = vpow.pop %v1021
    %v1038 = vpow.pop %v1022
    %v1039 = vpow.pop %v1023
    %1040 = vst [vmem:[#allocation2 + $0x300] sm:$0xff] %v1024
    %1041 = vst [vmem:[#allocation2 + $0x308] sm:$0xff] %v1025
    %1042 = vst [vmem:[#allocation2 + $0x310] sm:$0xff] %v1026
    %1043 = vst [vmem:[#allocation2 + $0x318] sm:$0xff] %v1027
    %1044 = vst [vmem:[#allocation2 + $0x320] sm:$0xff] %v1028
    %1045 = vst [vmem:[#allocation2 + $0x328] sm:$0xff] %v1029
    %1046 = vst [vmem:[#allocation2 + $0x330] sm:$0xff] %v1030
    %1047 = vst [vmem:[#allocation2 + $0x338] sm:$0xff] %v1031
    %1048 = vst [vmem:[#allocation2 + $0x340] sm:$0xff] %v1032
    %1049 = vst [vmem:[#allocation2 + $0x348] sm:$0xff] %v1033
    %1050 = vst [vmem:[#allocation2 + $0x350] sm:$0xff] %v1034
    %1051 = vst [vmem:[#allocation2 + $0x358] sm:$0xff] %v1035
    %1052 = vst [vmem:[#allocation2 + $0x360] sm:$0xff] %v1036
    %1053 = vst [vmem:[#allocation2 + $0x368] sm:$0xff] %v1037
    %1054 = vst [vmem:[#allocation2 + $0x370] sm:$0xff] %v1038
    %1055 = vst [vmem:[#allocation2 + $0x378] sm:$0xff] %v1039
    %1056 = vset.pattern.permute.xlu0 7
    %1057 = vperm.xlu0 %1056, %v13
    %v1058 = vpop.permute.xlu0 %1057
    %1060 = vset.pattern.permute.xlu0 7
    %1061 = vperm.xlu0 %1060, %v14
    %v1062 = vpop.permute.xlu0 %1061
    %1064 = vset.pattern.permute.xlu0 7
    %1065 = vperm.xlu0 %1064, %v15
    %v1066 = vpop.permute.xlu0 %1065
    %1068 = vset.pattern.permute.xlu0 7
    %1069 = vperm.xlu0 %1068, %v16
    %v1070 = vpop.permute.xlu0 %1069
    %1072 = vset.pattern.permute.xlu0 7
    %1073 = vperm.xlu0 %1072, %v17
    %v1074 = vpop.permute.xlu0 %1073
    %1076 = vset.pattern.permute.xlu0 7
    %1077 = vperm.xlu0 %1076, %v18
    %v1078 = vpop.permute.xlu0 %1077
    %1080 = vset.pattern.permute.xlu0 7
    %1081 = vperm.xlu0 %1080, %v19
    %v1082 = vpop.permute.xlu0 %1081
    %1084 = vset.pattern.permute.xlu0 7
    %1085 = vperm.xlu0 %1084, %v20
    %v1086 = vpop.permute.xlu0 %1085
    %1088 = vset.pattern.permute.xlu0 7
    %1089 = vperm.xlu0 %1088, %v21
    %v1090 = vpop.permute.xlu0 %1089
    %1092 = vset.pattern.permute.xlu0 7
    %1093 = vperm.xlu0 %1092, %v22
    %v1094 = vpop.permute.xlu0 %1093
    %1096 = vset.pattern.permute.xlu0 7
    %1097 = vperm.xlu0 %1096, %v23
    %v1098 = vpop.permute.xlu0 %1097
    %1100 = vset.pattern.permute.xlu0 7
    %1101 = vperm.xlu0 %1100, %v24
    %v1102 = vpop.permute.xlu0 %1101
    %1104 = vset.pattern.permute.xlu0 7
    %1105 = vperm.xlu0 %1104, %v25
    %v1106 = vpop.permute.xlu0 %1105
    %1108 = vset.pattern.permute.xlu0 7
    %1109 = vperm.xlu0 %1108, %v26
    %v1110 = vpop.permute.xlu0 %1109
    %1112 = vset.pattern.permute.xlu0 7
    %1113 = vperm.xlu0 %1112, %v27
    %v1114 = vpop.permute.xlu0 %1113
    %1116 = vset.pattern.permute.xlu0 7
    %1117 = vperm.xlu0 %1116, %v28
    %v1118 = vpop.permute.xlu0 %1117
    %v1120 = vsub.f32 %v1058, %v110
    %v1121 = vsub.f32 %v1062, %v110
    %v1122 = vsub.f32 %v1066, %v110
    %v1123 = vsub.f32 %v1070, %v110
    %v1124 = vsub.f32 %v1074, %v110
    %v1125 = vsub.f32 %v1078, %v110
    %v1126 = vsub.f32 %v1082, %v110
    %v1127 = vsub.f32 %v1086, %v110
    %v1128 = vsub.f32 %v1090, %v110
    %v1129 = vsub.f32 %v1094, %v110
    %v1130 = vsub.f32 %v1098, %v110
    %v1131 = vsub.f32 %v1102, %v110
    %v1132 = vsub.f32 %v1106, %v110
    %v1133 = vsub.f32 %v1110, %v110
    %v1134 = vsub.f32 %v1114, %v110
    %v1135 = vsub.f32 %v1118, %v110
    %v1136 = vmul.f32 %v1120, -465.38455
    %v1137 = vmul.f32 %v1121, -465.38455
    %v1138 = vmul.f32 %v1122, -465.38455
    %v1139 = vmul.f32 %v1123, -465.38455
    %v1140 = vmul.f32 %v1124, -465.38455
    %v1141 = vmul.f32 %v1125, -465.38455
    %v1142 = vmul.f32 %v1126, -465.38455
    %v1143 = vmul.f32 %v1127, -465.38455
    %v1144 = vmul.f32 %v1128, -465.38455
    %v1145 = vmul.f32 %v1129, -465.38455
    %v1146 = vmul.f32 %v1130, -465.38455
    %v1147 = vmul.f32 %v1131, -465.38455
    %v1148 = vmul.f32 %v1132, -465.38455
    %v1149 = vmul.f32 %v1133, -465.38455
    %v1150 = vmul.f32 %v1134, -465.38455
    %v1151 = vmul.f32 %v1135, -465.38455
    %v1152 = vmul.f32 %v1136, %v1120
    %v1153 = vmul.f32 %v1137, %v1121
    %v1154 = vmul.f32 %v1138, %v1122
    %v1155 = vmul.f32 %v1139, %v1123
    %v1156 = vmul.f32 %v1140, %v1124
    %v1157 = vmul.f32 %v1141, %v1125
    %v1158 = vmul.f32 %v1142, %v1126
    %v1159 = vmul.f32 %v1143, %v1127
    %v1160 = vmul.f32 %v1144, %v1128
    %v1161 = vmul.f32 %v1145, %v1129
    %v1162 = vmul.f32 %v1146, %v1130
    %v1163 = vmul.f32 %v1147, %v1131
    %v1164 = vmul.f32 %v1148, %v1132
    %v1165 = vmul.f32 %v1149, %v1133
    %v1166 = vmul.f32 %v1150, %v1134
    %v1167 = vmul.f32 %v1151, %v1135
    %v1168 = vpow.pop %v1152
    %v1169 = vpow.pop %v1153
    %v1170 = vpow.pop %v1154
    %v1171 = vpow.pop %v1155
    %v1172 = vpow.pop %v1156
    %v1173 = vpow.pop %v1157
    %v1174 = vpow.pop %v1158
    %v1175 = vpow.pop %v1159
    %v1176 = vpow.pop %v1160
    %v1177 = vpow.pop %v1161
    %v1178 = vpow.pop %v1162
    %v1179 = vpow.pop %v1163
    %v1180 = vpow.pop %v1164
    %v1181 = vpow.pop %v1165
    %v1182 = vpow.pop %v1166
    %v1183 = vpow.pop %v1167
    %1184 = vst [vmem:[#allocation2 + $0x380] sm:$0xff] %v1168
    %1185 = vst [vmem:[#allocation2 + $0x388] sm:$0xff] %v1169
    %1186 = vst [vmem:[#allocation2 + $0x390] sm:$0xff] %v1170
    %1187 = vst [vmem:[#allocation2 + $0x398] sm:$0xff] %v1171
    %1188 = vst [vmem:[#allocation2 + $0x3a0] sm:$0xff] %v1172
    %1189 = vst [vmem:[#allocation2 + $0x3a8] sm:$0xff] %v1173
    %1190 = vst [vmem:[#allocation2 + $0x3b0] sm:$0xff] %v1174
    %1191 = vst [vmem:[#allocation2 + $0x3b8] sm:$0xff] %v1175
    %1192 = vst [vmem:[#allocation2 + $0x3c0] sm:$0xff] %v1176
    %1193 = vst [vmem:[#allocation2 + $0x3c8] sm:$0xff] %v1177
    %1194 = vst [vmem:[#allocation2 + $0x3d0] sm:$0xff] %v1178
    %1195 = vst [vmem:[#allocation2 + $0x3d8] sm:$0xff] %v1179
    %1196 = vst [vmem:[#allocation2 + $0x3e0] sm:$0xff] %v1180
    %1197 = vst [vmem:[#allocation2 + $0x3e8] sm:$0xff] %v1181
    %1198 = vst [vmem:[#allocation2 + $0x3f0] sm:$0xff] %v1182
    %1199 = vst [vmem:[#allocation2 + $0x3f8] sm:$0xff] %v1183
    // Predicated region
    $region10: #{tpu_custom_call.1} parent=1 // pred_check
      _
    $region11: #{tpu_custom_call.1} parent=1 // pred_check_branch
      %1201 = sbr.rel (0) target = $region13
    $region12: #{tpu_custom_call.1} parent=1 // pred_region
      %1203 = vsyncadd [#allocation3], 384
      %s1204 = sshll.u32 [#allocation2], 4
      %s1205 = int_to_ptr.vmem [resolvable:$true] %s1204
      %s1206 = sshll.u32 %s2, 4
      %s1207 = int_to_ptr.hbm [resolvable:$true] %s1206
      %1212 = dma.vmem_to_hbm [thread:$0]  %s1205, 16000, %s1207, [#allocation3], 128, 128, 8
    $region13: #{tpu_custom_call.1} parent=1 // pred_fallthru
      _
    // Predicated region
    $region14: #{tpu_custom_call.1} parent=1 // pred_check
      _
    $region15: #{tpu_custom_call.1} parent=1 // pred_check_branch
      %1214 = sbr.rel (0) target = $region17
    $region16: #{tpu_custom_call.1} parent=1 // pred_region
      %1216 = dma.done [#allocation3], 16384
    $region17: #{tpu_custom_call.1} parent=1 // pred_fallthru
      _
    %1217 = vsyncpa [#allocation3], 1

</llo_original>
